<compile_context>
chip_gen: v7x
topology: tpu7x:2x2x1
jax: 0.10.0
libtpu: 0.0.40
codegen_flags: <defaults>
</compile_context>

<pallas_src>
import functools

import jax
import jax.numpy as jnp
from jax.experimental import pallas as pl
from jax.experimental.pallas import tpu as pltpu


_MIN_BYTES_TO_SPLIT = 1 << 20   # tensors above this always get a multi-step grid
_MIN_PIPELINE_STEPS = 8         # >= 2x TC count (v7x) and enough for DMA overlap


def _block_and_vmem_budget(q, itemsize):
    """Per-generation block-size target (bytes) and explicit VMEM limit."""
    try:
        info = pltpu.get_tpu_info()
        cap = int(getattr(info, "vmem_capacity_bytes", 64 << 20))
    except Exception:  # conservative fallback (assume smallest: v7x per-TC)
        cap = 64 << 20
    if cap >= 96 << 20:            # v5e / v6e: 128 MiB physical VMEM
        vmem_limit = 96 << 20
        block = (8 << 20) if q == 0.0 else (4 << 20)
    else:                          # v7x: 64 MiB per TensorCore
        vmem_limit = 48 << 20
        block = (6 << 20) if q == 0.0 else (3 << 20)
    # Generic-q path promotes to f32 in-kernel; shrink sub-32-bit blocks so the
    # f32 temporaries keep roughly the same VMEM footprint as the f32 case.
    if q != 0.0 and itemsize < 4:
        block = max(1 << 20, block * itemsize // 4)
    return block, vmem_limit


def _pow_const(x, p):
    """x ** p for a compile-time constant p (x >= 0 for non-integer p).

    Specializes integer / quarter-fraction exponents to multiplies + sqrt and
    negative exponents to a reciprocal, so common q values never hit the
    generic exp/log pow on the single EUP slot.
    """
    p = float(p)
    if p == 0.0:
        return jnp.ones_like(x)
    if p < 0.0:
        return 1.0 / _pow_const(x, -p)   # inf at x == 0, matching the reference
    ip = int(p)
    frac = p - ip
    if ip <= 16 and frac in (0.0, 0.25, 0.5, 0.75):
        if frac == 0.5:
            out = jnp.sqrt(x)
        elif frac == 0.25:
            out = jnp.sqrt(jnp.sqrt(x))
        elif frac == 0.75:
            r = jnp.sqrt(x)
            out = r * jnp.sqrt(r)
        else:
            out = None
        if ip:
            acc, b, e = None, x, ip
            while True:                   # repeated squaring for the integer part
                if e & 1:
                    acc = b if acc is None else acc * b
                e >>= 1
                if not e:
                    break
                b = b * b
            out = acc if out is None else out * acc
        return out
    return x ** p                         # generic fallback (EUP exp + log)


def _shifted_qsoftplus_kernel(x_ref, o_ref, *, q):
    x = x_ref[...]
    if q == 0.0:
        # Exact ReLU limit: no transcendentals, pure VPU, native dtype.
        o_ref[...] = jnp.maximum(x, 0.0).astype(o_ref.dtype)
        return

    omq = 1.0 - q
    inv_omq = 1.0 / omq
    xf = x.astype(jnp.float32)
    # qexp(x - 1/(1-q), q): 1 + (1-q)*(x - 1/(1-q)) simplifies to (1-q)*x.
    base = jnp.maximum(omq * xf, 0.0)
    qe = _pow_const(base, inv_omq)
    # qlog(1 + qexp(...), q).
    # NOTE: q > 1 makes 1/(1-q) < 0, so qe -> inf for x <= 0; inf/NaN propagate
    # identically to the reference formula.
    out = (_pow_const(1.0 + qe, omq) - 1.0) * inv_omq
    o_ref[...] = out.astype(o_ref.dtype)


def _qsp_math(x, q):
    """Pure-jnp reference (literal module formula); also the ragged-size path."""
    if q == 0.0:
        return jnp.maximum(x, 0.0)
    omq = 1.0 - q
    inv_omq = 1.0 / omq
    xf = x.astype(jnp.float32)
    base = jnp.maximum(1.0 + omq * (xf - inv_omq), 0.0)
    qe = base ** inv_omq
    return (((1.0 + qe) ** omq) - 1.0) * inv_omq


def _pick_lane(n):
    for cand in (1024, 512, 256, 128):
        if n % cand == 0:
            return cand
    return None


def _launch(x2d, q):
    rows, lane = x2d.shape
    itemsize = jnp.dtype(x2d.dtype).itemsize
    # Sublane packing multiple: 8 for f32, 16 for bf16/f16, 32 for int8/fp8.
    sub = max(8, 32 // itemsize)
    block_target, vmem_limit = _block_and_vmem_budget(q, itemsize)

    row_bytes = lane * itemsize
    total_bytes = rows * row_bytes
    max_rows = max(sub, (block_target // row_bytes) // sub * sub)

    if total_bytes <= _MIN_BYTES_TO_SPLIT or rows <= sub:
        # Small tensors: a single full-extent block (always a legal block shape);
        # pipelining has nothing to hide at this size.
        block_rows = min(rows, max_rows)
    else:
        # Guarantee a multi-step grid so DMA double-buffering overlaps compute
        # and (on v7x) both TensorCores get work via the 'parallel' axis.
        by_steps = -(-rows // _MIN_PIPELINE_STEPS)     # ceil(rows / steps)
        by_steps = -(-by_steps // sub) * sub           # round up to sublane mult
        block_rows = max(sub, min(max_rows, by_steps))

    grid = (pl.cdiv(rows, block_rows),)
    kernel = functools.partial(_shifted_qsoftplus_kernel, q=q)
    return pl.pallas_call(
        kernel,
        out_shape=jax.ShapeDtypeStruct((rows, lane), x2d.dtype),
        grid_spec=pltpu.PrefetchScalarGridSpec(
            num_scalar_prefetch=0,
            grid=grid,
            in_specs=[pl.BlockSpec((block_rows, lane), lambda i: (i, 0))],
            out_specs=pl.BlockSpec((block_rows, lane), lambda i: (i, 0)),
        ),
        compiler_params=pltpu.CompilerParams(
            dimension_semantics=("parallel",),
            vmem_limit_bytes=vmem_limit,
        ),
    )(x2d)


@functools.partial(jax.jit, static_argnames=("q",))
def shifted_q_softplus(x, q=0.0):
    """Applies ShiftedqSoftplus elementwise. Accepts any shape (e.g. NCHW)."""
    q = float(q)
    if q == 1.0:
        # TODO(synk): q == 1 softplus limit not implemented (the reference
        # module divides by zero there as well).
        raise NotImplementedError("ShiftedqSoftplus: q == 1 is not supported")

    orig_shape = x.shape
    n = x.size
    if n == 0:
        return x
    flat = x.reshape(-1)

    lane = _pick_lane(n)
    if lane is not None:
        out = _launch(flat.reshape(n // lane, lane), q)
        return out.reshape(orig_shape)

    # Ragged total size (not a multiple of 128): stitching a Pallas bulk with a
    # jnp tail costs an extra full HBM pass (concatenate); XLA's fused
    # elementwise op is already at the HBM roofline here, so use it directly.
    return _qsp_math(flat, q).astype(x.dtype).reshape(orig_shape)


def _reference(x, q=0.0):
    return _qsp_math(x, float(q)).astype(x.dtype)


if __name__ == "__main__":
    key = jax.random.PRNGKey(0)

    # NCHW-style conv activation (small).
    x = jax.random.normal(key, (2, 4, 16, 16), dtype=jnp.float32)

    # Default q = 0.0 (exact ReLU limit).
    y = jax.block_until_ready(shifted_q_softplus(x, q=0.0))
    assert y.shape == x.shape and y.dtype == x.dtype
    assert jnp.allclose(y, _reference(x, 0.0), atol=1e-5, rtol=1e-5), "mismatch (q=0)"
    assert jnp.array_equal(y, jnp.maximum(x, 0.0)), "q=0 must be exact ReLU"

    # Generic-q path (exercises the pow specializations: square + sqrt).
    y5 = jax.block_until_ready(shifted_q_softplus(x, q=0.5))
    assert jnp.allclose(y5, _reference(x, 0.5), atol=1e-5, rtol=1e-5), "mismatch (q=0.5)"

    # Larger 128-aligned input: exercises the multi-step pipelined grid.
    xb = jax.random.normal(jax.random.PRNGKey(1), (8, 16, 64, 64), dtype=jnp.float32)
    yb = jax.block_until_ready(shifted_q_softplus(xb, q=0.5))
    assert jnp.allclose(yb, _reference(xb, 0.5), atol=1e-5, rtol=1e-5), "mismatch (big)"

    # Ragged total size (fused-XLA fallback, no concatenate / extra HBM pass).
    xr = jax.random.normal(jax.random.PRNGKey(2), (3, 5, 7), dtype=jnp.float32)
    yr = jax.block_until_ready(shifted_q_softplus(xr, q=0.5))
    assert jnp.allclose(yr, _reference(xr, 0.5), atol=1e-5, rtol=1e-5), "mismatch (ragged)"

    print("KERNEL_OK")
</pallas_src>

<mosaic_0001>
module attributes {stable_mosaic.version = 11 : i64} {
  func.func @_shifted_qsoftplus_kernel(%arg0: i32, %arg1: memref<2x1024xf32, #tpu.memory_space<vmem>>, %arg2: memref<2x1024xf32, #tpu.memory_space<vmem>>) attributes {dimension_semantics = [#tpu.dimension_semantics<parallel>], iteration_bounds = array<i64: 1>, scalar_prefetch = 0 : i64, scratch_operands = 0 : i64, tpu.core_type = #tpu.core_type<tc>, window_params = [{transform_indices = @transform_0, window_bounds = array<i64: 2, 1024>}, {transform_indices = @transform_1, window_bounds = array<i64: 2, 1024>}]} {
    %c0 = arith.constant 0 : index
    %c0_0 = arith.constant 0 : index
    %0 = vector.load %arg1[%c0, %c0_0] : memref<2x1024xf32, #tpu.memory_space<vmem>>, vector<2x1024xf32>
    %cst = arith.constant 0.000000e+00 : f32
    %1 = vector.broadcast %cst : f32 to vector<2x1024xf32>
    %2 = arith.maximumf %0, %1 : vector<2x1024xf32>
    %c0_1 = arith.constant 0 : index
    %c0_2 = arith.constant 0 : index
    %3 = vector.load %arg2[%c0_1, %c0_2] : memref<2x1024xf32, #tpu.memory_space<vmem>>, vector<2x1024xf32>
    tpu.vector_store %arg2[%c0_1, %c0_2], %2 {strides = array<i32>} : memref<2x1024xf32, #tpu.memory_space<vmem>>, vector<2x1024xf32>,
    return
  }
  func.func @transform_0(%arg0: i32) -> (i32, i32) {
    %c0_i32 = arith.constant 0 : i32
    %c0_i32_0 = arith.constant 0 : i32
    return %arg0, %c0_i32 : i32, i32
  }
  func.func @transform_1(%arg0: i32) -> (i32, i32) {
    %c0_i32 = arith.constant 0 : i32
    %c0_i32_0 = arith.constant 0 : i32
    return %arg0, %c0_i32 : i32, i32
  }
}

</mosaic_0001>

<llo_original>
// kernel: shifted_q_softplus.1
$region0: #{shifted_q_softplus.1}
  #allocation0 [shape = 'u32[]', space=smem, size = 0x4, offset = 0x4, fixed_abs, tag = 'smem constant byte address 0x4 - core index']
  #allocation1 [shape = 'u32[144,128]{1,0:T(1,128)}', space=vmem, size = 0x12000, scoped, tag = 'internal scratch']
  %s0 = inlined_call_operand.vmem [shape: f32[2,1024], index: 0, kind: input, shape index: {}]
  %s1 = inlined_call_operand.vmem [shape: f32[2,1024], index: 1, kind: output, shape index: {}]
  %s2 = sld [smem:[#allocation0]]
  $region14: #{shifted_q_softplus.1} parent=0
    _
  %s4 = ssub.s32 1, %s2
  %s5 = scalar_select 0, %s4, %s2
  // Predicated region
  $region2: #{shifted_q_softplus.1} parent=0 // pred_check
    _
  $region3: #{shifted_q_softplus.1} parent=0 // pred_check_branch
    %7 = sbr.rel (0) target = $region5
  $region4: #{shifted_q_softplus.1} parent=0 // pred_region
    _
  $region5: #{shifted_q_softplus.1} parent=0 // pred_fallthru
    _
  %v8 = vld [vmem:[%s0] sm:$0xff]
  %v9 = vld [vmem:[%s0 + $0x8] sm:$0xff]
  %v10 = vmax.f32 %v8, 0.0
  %v11 = vmax.f32 %v9, 0.0
  %12 = vst [vmem:[%s1] sm:$0xff] %v10
  %13 = vst [vmem:[%s1 + $0x8] sm:$0xff] %v11
  // Predicated region
  $region6: #{shifted_q_softplus.1} parent=0 // pred_check
    _
  $region7: #{shifted_q_softplus.1} parent=0 // pred_check_branch
    %15 = sbr.rel (0) target = $region9
  $region8: #{shifted_q_softplus.1} parent=0 // pred_region
    _
  $region9: #{shifted_q_softplus.1} parent=0 // pred_fallthru
    _
  // Predicated region
  $region10: #{shifted_q_softplus.1} parent=0 // pred_check
    _
  $region11: #{shifted_q_softplus.1} parent=0 // pred_check_branch
    %17 = sbr.rel (0) target = $region13
  $region12: #{shifted_q_softplus.1} parent=0 // pred_region
    _
  $region13: #{shifted_q_softplus.1} parent=0 // pred_fallthru
    _

</llo_original>
